<compile_context>
chip_gen: v5e
topology: v5e:2x2
jax: 0.10.0
libtpu: 0.0.40
codegen_flags: <defaults>
</compile_context>

<pallas_src>
import functools

import jax
import jax.numpy as jnp
from jax.experimental import pallas as pl
from jax.experimental.pallas import tpu as pltpu


BN_EPS = 1e-5   # nn.BatchNorm1d default
LANE = 128      # TPU lane width


def _round_up(v, m):
    return (v + m - 1) // m * m


def _pad_dim(d):
    # Lane-pad; use 256-aligned dims (v6e/v7x native MXU width) once the real
    # dim exceeds one 128-lane tile.
    return _round_up(d, 256 if d > 128 else 128)


def _pad2(a, rows, cols):
    r, c = a.shape
    return jnp.pad(a, ((0, rows - r), (0, cols - c)))


def _vmem_limit_bytes():
    phys = 64 * 1024 * 1024                      # conservative fallback (v7x physical)
    try:
        phys = int(pltpu.get_tpu_info().vmem_capacity_bytes)
    except Exception:
        pass
    # ~75% of physical, capped: 96 MiB on v5e/v6e, 48 MiB on v7x.
    return int(min(phys * 3 // 4, 100 * 1024 * 1024))


def _barlow_stats_kernel(x1_ref, x2_ref,          # (tile_b, F) bf16 each
                         we_ref, be_ref,          # encoder Linear
                         w1_ref, b1_ref,          # proj Linear 1
                         w2_ref, b2_ref,          # proj Linear 2
                         g_ref,                   # (dp_pad, dp_pad) f32 partial G
                         mom_ref,                 # (8, dp_pad) f32 partial moments
                         *, tile_b):
    # Output blocks are resident across the inner ("arbitrary") reduction axis.
    @pl.when(pl.program_id(1) == 0)
    def _init():
        g_ref[...] = jnp.zeros_like(g_ref)
        mom_ref[...] = jnp.zeros_like(mom_ref)

    # ---- encoder + projector, both views fused into one (2*tile_b, F) batch --
    # Fusion happens in VMEM/vregs (no wrapper-side HBM interleave).
    x = jnp.concatenate([x1_ref[...], x2_ref[...]], axis=0)           # bf16
    h = jnp.dot(x, we_ref[...], preferred_element_type=jnp.float32) + be_ref[...]
    h = jnp.dot(h.astype(jnp.bfloat16), w1_ref[...],
                preferred_element_type=jnp.float32) + b1_ref[...]
    h = jnp.maximum(h, 0.0)                                           # ReLU in f32
    p = jnp.dot(h.astype(jnp.bfloat16), w2_ref[...],
                preferred_element_type=jnp.float32) + b2_ref[...]     # (2*tile_b, D) f32

    p1 = p[:tile_b, :]
    p2 = p[tile_b:, :]
    dp = p.shape[1]

    # ---- raw cross product P1^T @ P2 (f32 operands: corr stays accurate) -----
    g_ref[...] += jax.lax.dot_general(
        p1, p2, (((0,), (0,)), ((), ())), preferred_element_type=jnp.float32)

    # ---- BatchNorm sufficient statistics, packed into one (8, dp) block ------
    mom_ref[...] += jnp.concatenate(
        [jnp.sum(p1, axis=0, keepdims=True),
         jnp.sum(p2, axis=0, keepdims=True),
         jnp.sum(p1 * p1, axis=0, keepdims=True),
         jnp.sum(p2 * p2, axis=0, keepdims=True),
         jnp.zeros((4, dp), jnp.float32)], axis=0)


@functools.partial(jax.jit, static_argnames=("tile_b", "buffered"))
def _forward(x1, x2, we, be, w1, b1, w2, b2, regularizer, *, tile_b, buffered):
    b, feat = x1.shape
    in_dim = we.shape[1]
    proj_dim = w2.shape[1]

    assert b % tile_b == 0 and tile_b % 16 == 0, \
        "batch must split into tiles that are multiples of 16"
    n_tiles = b // tile_b
    # Outer "parallel" axis: 2 splits when possible (one per v7x TensorCore).
    n_splits = 2 if (n_tiles % 2 == 0 and n_tiles >= 2) else 1
    n_inner = n_tiles // n_splits

    f_pad = _pad_dim(feat)
    di_pad = _pad_dim(in_dim)
    dp_pad = _pad_dim(proj_dim)

    # Pad feature dims to full lanes; matmul operands in bf16, biases stay f32.
    x1p = _pad2(x1, b, f_pad).astype(jnp.bfloat16)
    x2p = _pad2(x2, b, f_pad).astype(jnp.bfloat16)
    wep = _pad2(we, f_pad, di_pad).astype(jnp.bfloat16)
    bep = _pad2(be, 1, di_pad)
    w1p = _pad2(w1, di_pad, di_pad).astype(jnp.bfloat16)
    b1p = _pad2(b1, 1, di_pad)
    w2p = _pad2(w2, di_pad, dp_pad).astype(jnp.bfloat16)
    b2p = _pad2(b2, 1, dp_pad)

    def wspec(shape, index_map, buffers=None):
        if buffered and buffers is not None and hasattr(pl, "Buffered"):
            try:
                return pl.BlockSpec(shape, index_map,
                                    pipeline_mode=pl.Buffered(buffers))
            except TypeError:   # older BlockSpec signature
                pass
        return pl.BlockSpec(shape, index_map)

    in_specs = [
        # streaming inputs: deeper buffering to hide HBM latency behind matmuls
        wspec((tile_b, f_pad), lambda c, j: (c * n_inner + j, 0), 3),   # x1 tile
        wspec((tile_b, f_pad), lambda c, j: (c * n_inner + j, 0), 3),   # x2 tile
        # constant-index weights/biases: single-buffered (no VMEM waste)
        wspec((f_pad, di_pad), lambda c, j: (0, 0), 1),                 # encoder W
        wspec((1, di_pad), lambda c, j: (0, 0), 1),                     # encoder b
        wspec((di_pad, di_pad), lambda c, j: (0, 0), 1),                # proj W1
        wspec((1, di_pad), lambda c, j: (0, 0), 1),                     # proj b1
        wspec((di_pad, dp_pad), lambda c, j: (0, 0), 1),                # proj W2
        wspec((1, dp_pad), lambda c, j: (0, 0), 1),                     # proj b2
    ]
    out_specs = [
        pl.BlockSpec((dp_pad, dp_pad), lambda c, j: (c, 0)),            # partial G
        pl.BlockSpec((8, dp_pad), lambda c, j: (c, 0)),                 # partial moments
    ]
    out_shape = (
        jax.ShapeDtypeStruct((n_splits * dp_pad, dp_pad), jnp.float32),
        jax.ShapeDtypeStruct((n_splits * 8, dp_pad), jnp.float32),
    )

    g_parts, mom_parts = pl.pallas_call(
        functools.partial(_barlow_stats_kernel, tile_b=tile_b),
        out_shape=out_shape,
        grid_spec=pltpu.PrefetchScalarGridSpec(
            num_scalar_prefetch=0,
            grid=(n_splits, n_inner),
            in_specs=in_specs,
            out_specs=out_specs,
        ),
        compiler_params=pltpu.CompilerParams(
            dimension_semantics=("parallel", "arbitrary"),
            vmem_limit_bytes=_vmem_limit_bytes(),
        ),
    )(x1p, x2p, wep, bep, w1p, b1p, w2p, b2p)

    # ---- tiny f32 finalize in plain JAX (combines per-core partials) ---------
    g = g_parts.reshape(n_splits, dp_pad, dp_pad).sum(axis=0)[:proj_dim, :proj_dim]
    mom = mom_parts.reshape(n_splits, 8, dp_pad).sum(axis=0)[:, :proj_dim]
    s1, s2, q1, q2 = mom[0], mom[1], mom[2], mom[3]

    inv_b = jnp.float32(1.0 / b)
    mu1, mu2 = s1 * inv_b, s2 * inv_b
    var1 = jnp.maximum(q1 * inv_b - mu1 * mu1, 0.0)
    var2 = jnp.maximum(q2 * inv_b - mu2 * mu2, 0.0)
    inv1 = jax.lax.rsqrt(var1 + BN_EPS)
    inv2 = jax.lax.rsqrt(var2 + BN_EPS)

    # corr[a,b] = inv1[a]*inv2[b]*(G[a,b]/B - mu1[a]*mu2[b])  ==  z1.T @ z2 / B
    corr = (g * inv_b - mu1[:, None] * mu2[None, :]) * (inv1[:, None] * inv2[None, :])

    eye = jnp.eye(proj_dim, dtype=bool)
    on_diag = jnp.sum((jnp.diagonal(corr) - 1.0) ** 2)
    off_diag = jnp.sum(jnp.where(eye, 0.0, corr) ** 2)
    return on_diag + regularizer * off_diag


def barlow_twins_forward(x1, x2, params, regularizer, *, tile_b=256):
    eff_tile = min(tile_b, x1.shape[0])
    args = (x1, x2, params["we"], params["be"], params["w1"], params["b1"],
            params["w2"], params["b2"], jnp.float32(regularizer))
    try:
        return _forward(*args, tile_b=eff_tile, buffered=True)
    except Exception:
        # pipeline_mode / pl.Buffered unsupported by this jax build: retrace
        # with default (double-buffered) BlockSpecs.
        return _forward(*args, tile_b=eff_tile, buffered=False)


def _reference_forward(x1, x2, params, regularizer):
    """Pure-JAX (f32) reference of the module's math, for correctness check."""
    def encoder(x):
        return x @ params["we"] + params["be"]

    def proj(h):
        h = jnp.maximum(h @ params["w1"] + params["b1"], 0.0)
        return h @ params["w2"] + params["b2"]

    def bn(p):
        mu = jnp.mean(p, axis=0, keepdims=True)
        var = jnp.mean((p - mu) ** 2, axis=0, keepdims=True)
        return (p - mu) / jnp.sqrt(var + BN_EPS)

    p1 = proj(encoder(x1))
    p2 = proj(encoder(x2))
    z1, z2 = bn(p1), bn(p2)
    corr = z1.T @ z2 / p1.shape[0]
    eye = jnp.eye(corr.shape[0], dtype=bool)
    on_diag = jnp.sum((jnp.diagonal(corr) - 1.0) ** 2)
    off_diag = jnp.sum(jnp.where(eye, 0.0, corr) ** 2)
    return on_diag + regularizer * off_diag


def _init_linear(key, fan_in, fan_out):
    """Deterministic init matching PyTorch nn.Linear's uniform(-1/sqrt(fan_in))."""
    kw, kb = jax.random.split(key)
    bound = 1.0 / jnp.sqrt(jnp.float32(fan_in))
    # stored as (fan_in, fan_out) so the kernel computes x @ W (i.e. W = W_torch.T)
    w = jax.random.uniform(kw, (fan_in, fan_out), jnp.float32, -bound, bound)
    b = jax.random.uniform(kb, (1, fan_out), jnp.float32, -bound, bound)
    return w, b


if __name__ == "__main__":
    # Small deterministic example shapes.
    batch = 64       # per-view batch
    feat_dim = 16    # raw input feature dim seen by the encoder
    in_dim = 32      # encoder output / projector hidden dim
    proj_dim = 16    # projector output dim
    regularizer = 0.005

    key = jax.random.PRNGKey(0)
    kx1, kx2, ke, k1, k2 = jax.random.split(key, 5)

    x1 = jax.random.normal(kx1, (batch, feat_dim), jnp.float32)
    x2 = jax.random.normal(kx2, (batch, feat_dim), jnp.float32)

    we, be = _init_linear(ke, feat_dim, in_dim)   # encoder: Linear(feat, in_dim)
    w1, b1 = _init_linear(k1, in_dim, in_dim)     # proj[0]: Linear(in_dim, in_dim)
    w2, b2 = _init_linear(k2, in_dim, proj_dim)   # proj[2]: Linear(in_dim, proj_dim)
    params = {"we": we, "be": be, "w1": w1, "b1": b1, "w2": w2, "b2": b2}

    ref = jax.block_until_ready(_reference_forward(x1, x2, params, regularizer))

    # Default (production-sized) tile: clamps to the batch -> single grid step.
    loss_big = jax.block_until_ready(
        barlow_twins_forward(x1, x2, params, regularizer))
    # Small tile to exercise the full 2-D grid (2 parallel splits x 2 reduction steps).
    loss_small = jax.block_until_ready(
        barlow_twins_forward(x1, x2, params, regularizer, tile_b=16))

    # Tolerance accounts for bf16 MXU operands (f32 accumulation) in the
    # encoder/projector matmuls.
    assert jnp.allclose(loss_big, ref, rtol=5e-2, atol=5e-2), (loss_big, ref)
    assert jnp.allclose(loss_small, ref, rtol=5e-2, atol=5e-2), (loss_small, ref)
    print("KERNEL_OK")
</pallas_src>

<mosaic_0001>
module attributes {stable_mosaic.version = 11 : i64} {
  func.func @_barlow_stats_kernel(%arg0: i32, %arg1: i32, %arg2: memref<64x128xbf16, #tpu.memory_space<vmem>>, %arg3: memref<64x128xbf16, #tpu.memory_space<vmem>>, %arg4: memref<128x128xbf16, #tpu.memory_space<vmem>>, %arg5: memref<1x128xf32, #tpu.memory_space<vmem>>, %arg6: memref<128x128xbf16, #tpu.memory_space<vmem>>, %arg7: memref<1x128xf32, #tpu.memory_space<vmem>>, %arg8: memref<128x128xbf16, #tpu.memory_space<vmem>>, %arg9: memref<1x128xf32, #tpu.memory_space<vmem>>, %arg10: memref<128x128xf32, #tpu.memory_space<vmem>>, %arg11: memref<8x128xf32, #tpu.memory_space<vmem>>) attributes {dimension_semantics = [#tpu.dimension_semantics<parallel>, #tpu.dimension_semantics<arbitrary>], iteration_bounds = array<i64: 1, 1>, scalar_prefetch = 0 : i64, scratch_operands = 0 : i64, tpu.core_type = #tpu.core_type<tc>, window_params = [{transform_indices = @transform_0, window_bounds = array<i64: 64, 128>}, {transform_indices = @transform_1, window_bounds = array<i64: 64, 128>}, {pipeline_mode = #tpu.pipeline_mode<synchronous>, transform_indices = @transform_2, window_bounds = array<i64: 128, 128>}, {pipeline_mode = #tpu.pipeline_mode<synchronous>, transform_indices = @transform_3, window_bounds = array<i64: 1, 128>}, {pipeline_mode = #tpu.pipeline_mode<synchronous>, transform_indices = @transform_4, window_bounds = array<i64: 128, 128>}, {pipeline_mode = #tpu.pipeline_mode<synchronous>, transform_indices = @transform_5, window_bounds = array<i64: 1, 128>}, {pipeline_mode = #tpu.pipeline_mode<synchronous>, transform_indices = @transform_6, window_bounds = array<i64: 128, 128>}, {pipeline_mode = #tpu.pipeline_mode<synchronous>, transform_indices = @transform_7, window_bounds = array<i64: 1, 128>}, {transform_indices = @transform_8, window_bounds = array<i64: 128, 128>}, {transform_indices = @transform_9, window_bounds = array<i64: 8, 128>}]} {
    %c0_i32 = arith.constant 0 : i32
    %0 = arith.cmpi eq, %arg1, %c0_i32 : i32
    %1 = arith.extui %0 : i1 to i32
    %c0_i32_0 = arith.constant 0 : i32
    %2 = arith.cmpi ne, %1, %c0_i32_0 : i32
    scf.if %2 {
      %cst_33 = arith.constant 0.000000e+00 : f32
      %46 = vector.broadcast %cst_33 : f32 to vector<128x128xf32>
      %c0_34 = arith.constant 0 : index
      %c0_35 = arith.constant 0 : index
      %47 = vector.load %arg10[%c0_34, %c0_35] : memref<128x128xf32, #tpu.memory_space<vmem>>, vector<128x128xf32>
      tpu.vector_store %arg10[%c0_34, %c0_35], %46 {strides = array<i32>} : memref<128x128xf32, #tpu.memory_space<vmem>>, vector<128x128xf32>,
      %cst_36 = arith.constant 0.000000e+00 : f32
      %48 = vector.broadcast %cst_36 : f32 to vector<8x128xf32>
      %c0_37 = arith.constant 0 : index
      %c0_38 = arith.constant 0 : index
      %49 = vector.load %arg11[%c0_37, %c0_38] : memref<8x128xf32, #tpu.memory_space<vmem>>, vector<8x128xf32>
      tpu.vector_store %arg11[%c0_37, %c0_38], %48 {strides = array<i32>} : memref<8x128xf32, #tpu.memory_space<vmem>>, vector<8x128xf32>,
    } else {
    }
    %c0 = arith.constant 0 : index
    %c0_1 = arith.constant 0 : index
    %3 = vector.load %arg2[%c0, %c0_1] : memref<64x128xbf16, #tpu.memory_space<vmem>>, vector<64x128xbf16>
    %c0_2 = arith.constant 0 : index
    %c0_3 = arith.constant 0 : index
    %4 = vector.load %arg3[%c0_2, %c0_3] : memref<64x128xbf16, #tpu.memory_space<vmem>>, vector<64x128xbf16>
    %5 = tpu.concatenate %3, %4 in 0 : vector<64x128xbf16>, vector<64x128xbf16> -> vector<128x128xbf16>
    %c0_4 = arith.constant 0 : index
    %c0_5 = arith.constant 0 : index
    %6 = vector.load %arg4[%c0_4, %c0_5] : memref<128x128xbf16, #tpu.memory_space<vmem>>, vector<128x128xbf16>
    %cst = arith.constant dense<0.000000e+00> : vector<128x128xf32>
    %7 = tpu.matmul %5, %6, %cst {dimension_numbers = #tpu.dot_dimension_numbers<[1], [0], [0], [1], [0, 0, 1, 1], [], []>} : vector<128x128xbf16>, vector<128x128xbf16>, vector<128x128xf32> -> vector<128x128xf32>
    %c0_6 = arith.constant 0 : index
    %c0_7 = arith.constant 0 : index
    %8 = vector.load %arg5[%c0_6, %c0_7] : memref<1x128xf32, #tpu.memory_space<vmem>>, vector<1x128xf32>
    %9 = vector.broadcast %8 : vector<1x128xf32> to vector<128x128xf32>
    %10 = arith.addf %7, %9 : vector<128x128xf32>
    %11 = arith.truncf %10 : vector<128x128xf32> to vector<128x128xbf16>
    %c0_8 = arith.constant 0 : index
    %c0_9 = arith.constant 0 : index
    %12 = vector.load %arg6[%c0_8, %c0_9] : memref<128x128xbf16, #tpu.memory_space<vmem>>, vector<128x128xbf16>
    %cst_10 = arith.constant dense<0.000000e+00> : vector<128x128xf32>
    %13 = tpu.matmul %11, %12, %cst_10 {dimension_numbers = #tpu.dot_dimension_numbers<[1], [0], [0], [1], [0, 0, 1, 1], [], []>} : vector<128x128xbf16>, vector<128x128xbf16>, vector<128x128xf32> -> vector<128x128xf32>
    %c0_11 = arith.constant 0 : index
    %c0_12 = arith.constant 0 : index
    %14 = vector.load %arg7[%c0_11, %c0_12] : memref<1x128xf32, #tpu.memory_space<vmem>>, vector<1x128xf32>
    %15 = vector.broadcast %14 : vector<1x128xf32> to vector<128x128xf32>
    %16 = arith.addf %13, %15 : vector<128x128xf32>
    %cst_13 = arith.constant 0.000000e+00 : f32
    %17 = vector.broadcast %cst_13 : f32 to vector<128x128xf32>
    %18 = arith.maximumf %16, %17 : vector<128x128xf32>
    %19 = arith.truncf %18 : vector<128x128xf32> to vector<128x128xbf16>
    %c0_14 = arith.constant 0 : index
    %c0_15 = arith.constant 0 : index
    %20 = vector.load %arg8[%c0_14, %c0_15] : memref<128x128xbf16, #tpu.memory_space<vmem>>, vector<128x128xbf16>
    %cst_16 = arith.constant dense<0.000000e+00> : vector<128x128xf32>
    %21 = tpu.matmul %19, %20, %cst_16 {dimension_numbers = #tpu.dot_dimension_numbers<[1], [0], [0], [1], [0, 0, 1, 1], [], []>} : vector<128x128xbf16>, vector<128x128xbf16>, vector<128x128xf32> -> vector<128x128xf32>
    %c0_17 = arith.constant 0 : index
    %c0_18 = arith.constant 0 : index
    %22 = vector.load %arg9[%c0_17, %c0_18] : memref<1x128xf32, #tpu.memory_space<vmem>>, vector<1x128xf32>
    %23 = vector.broadcast %22 : vector<1x128xf32> to vector<128x128xf32>
    %24 = arith.addf %21, %23 : vector<128x128xf32>
    %25 = vector.extract_strided_slice %24 {offsets = [0, 0], sizes = [64, 128], strides = [1, 1]} : vector<128x128xf32> to vector<64x128xf32>
    %26 = vector.extract_strided_slice %24 {offsets = [64, 0], sizes = [64, 128], strides = [1, 1]} : vector<128x128xf32> to vector<64x128xf32>
    %c0_19 = arith.constant 0 : index
    %c0_20 = arith.constant 0 : index
    %27 = vector.load %arg10[%c0_19, %c0_20] : memref<128x128xf32, #tpu.memory_space<vmem>>, vector<128x128xf32>
    %cst_21 = arith.constant dense<0.000000e+00> : vector<128x128xf32>
    %28 = tpu.matmul %25, %26, %cst_21 {dimension_numbers = #tpu.dot_dimension_numbers<[0], [0], [1], [1], [0, 1, 1, 1], [], []>} : vector<64x128xf32>, vector<64x128xf32>, vector<128x128xf32> -> vector<128x128xf32>
    %29 = arith.addf %27, %28 : vector<128x128xf32>
    %c0_22 = arith.constant 0 : index
    %c0_23 = arith.constant 0 : index
    %30 = vector.load %arg10[%c0_22, %c0_23] : memref<128x128xf32, #tpu.memory_space<vmem>>, vector<128x128xf32>
    tpu.vector_store %arg10[%c0_22, %c0_23], %29 {strides = array<i32>} : memref<128x128xf32, #tpu.memory_space<vmem>>, vector<128x128xf32>,
    %c0_24 = arith.constant 0 : index
    %c0_25 = arith.constant 0 : index
    %31 = vector.load %arg11[%c0_24, %c0_25] : memref<8x128xf32, #tpu.memory_space<vmem>>, vector<8x128xf32>
    %cst_26 = arith.constant dense<0.000000e+00> : vector<128xf32>
    %32 = vector.multi_reduction <add>, %25, %cst_26 [0] : vector<64x128xf32> to vector<128xf32>
    %33 = vector.shape_cast %32 : vector<128xf32> to vector<1x128xf32>
    %cst_27 = arith.constant dense<0.000000e+00> : vector<128xf32>
    %34 = vector.multi_reduction <add>, %26, %cst_27 [0] : vector<64x128xf32> to vector<128xf32>
    %35 = vector.shape_cast %34 : vector<128xf32> to vector<1x128xf32>
    %36 = arith.mulf %25, %25 : vector<64x128xf32>
    %cst_28 = arith.constant dense<0.000000e+00> : vector<128xf32>
    %37 = vector.multi_reduction <add>, %36, %cst_28 [0] : vector<64x128xf32> to vector<128xf32>
    %38 = vector.shape_cast %37 : vector<128xf32> to vector<1x128xf32>
    %39 = arith.mulf %26, %26 : vector<64x128xf32>
    %cst_29 = arith.constant dense<0.000000e+00> : vector<128xf32>
    %40 = vector.multi_reduction <add>, %39, %cst_29 [0] : vector<64x128xf32> to vector<128xf32>
    %41 = vector.shape_cast %40 : vector<128xf32> to vector<1x128xf32>
    %cst_30 = arith.constant 0.000000e+00 : f32
    %42 = vector.broadcast %cst_30 : f32 to vector<4x128xf32>
    %43 = tpu.concatenate %33, %35, %38, %41, %42 in 0 : vector<1x128xf32>, vector<1x128xf32>, vector<1x128xf32>, vector<1x128xf32>, vector<4x128xf32> -> vector<8x128xf32>
    %44 = arith.addf %31, %43 : vector<8x128xf32>
    %c0_31 = arith.constant 0 : index
    %c0_32 = arith.constant 0 : index
    %45 = vector.load %arg11[%c0_31, %c0_32] : memref<8x128xf32, #tpu.memory_space<vmem>>, vector<8x128xf32>
    tpu.vector_store %arg11[%c0_31, %c0_32], %44 {strides = array<i32>} : memref<8x128xf32, #tpu.memory_space<vmem>>, vector<8x128xf32>,
    return
  }
  func.func @transform_0(%arg0: i32, %arg1: i32) -> (i32, i32) {
    %c1_i32 = arith.constant 1 : i32
    %0 = arith.muli %arg0, %c1_i32 : i32
    %1 = arith.addi %0, %arg1 : i32
    %c0_i32 = arith.constant 0 : i32
    %c0_i32_0 = arith.constant 0 : i32
    return %1, %c0_i32 : i32, i32
  }
  func.func @transform_1(%arg0: i32, %arg1: i32) -> (i32, i32) {
    %c1_i32 = arith.constant 1 : i32
    %0 = arith.muli %arg0, %c1_i32 : i32
    %1 = arith.addi %0, %arg1 : i32
    %c0_i32 = arith.constant 0 : i32
    %c0_i32_0 = arith.constant 0 : i32
    return %1, %c0_i32 : i32, i32
  }
  func.func @transform_2(%arg0: i32, %arg1: i32) -> (i32, i32) {
    %c0_i32 = arith.constant 0 : i32
    %c0_i32_0 = arith.constant 0 : i32
    %c0_i32_1 = arith.constant 0 : i32
    return %c0_i32, %c0_i32_0 : i32, i32
  }
  func.func @transform_3(%arg0: i32, %arg1: i32) -> (i32, i32) {
    %c0_i32 = arith.constant 0 : i32
    %c0_i32_0 = arith.constant 0 : i32
    %c0_i32_1 = arith.constant 0 : i32
    return %c0_i32, %c0_i32_0 : i32, i32
  }
  func.func @transform_4(%arg0: i32, %arg1: i32) -> (i32, i32) {
    %c0_i32 = arith.constant 0 : i32
    %c0_i32_0 = arith.constant 0 : i32
    %c0_i32_1 = arith.constant 0 : i32
    return %c0_i32, %c0_i32_0 : i32, i32
  }
  func.func @transform_5(%arg0: i32, %arg1: i32) -> (i32, i32) {
    %c0_i32 = arith.constant 0 : i32
    %c0_i32_0 = arith.constant 0 : i32
    %c0_i32_1 = arith.constant 0 : i32
    return %c0_i32, %c0_i32_0 : i32, i32
  }
  func.func @transform_6(%arg0: i32, %arg1: i32) -> (i32, i32) {
    %c0_i32 = arith.constant 0 : i32
    %c0_i32_0 = arith.constant 0 : i32
    %c0_i32_1 = arith.constant 0 : i32
    return %c0_i32, %c0_i32_0 : i32, i32
  }
  func.func @transform_7(%arg0: i32, %arg1: i32) -> (i32, i32) {
    %c0_i32 = arith.constant 0 : i32
    %c0_i32_0 = arith.constant 0 : i32
    %c0_i32_1 = arith.constant 0 : i32
    return %c0_i32, %c0_i32_0 : i32, i32
  }
  func.func @transform_8(%arg0: i32, %arg1: i32) -> (i32, i32) {
    %c0_i32 = arith.constant 0 : i32
    %c0_i32_0 = arith.constant 0 : i32
    return %arg0, %c0_i32 : i32, i32
  }
  func.func @transform_9(%arg0: i32, %arg1: i32) -> (i32, i32) {
    %c0_i32 = arith.constant 0 : i32
    %c0_i32_0 = arith.constant 0 : i32
    return %arg0, %c0_i32 : i32, i32
  }
}

</mosaic_0001>

<llo_original>
// kernel: _forward.1
$region0: #{_forward.1}
  #allocation0 [shape = 'u32[]', space=smem, size = 0x4, offset = 0x4, fixed_abs, tag = 'smem constant byte address 0x4 - core index']
  #allocation1 [shape = 'u32[72,128]{1,0:T(1,128)}', space=vmem, size = 0x9000, scoped, tag = 'internal scratch']
  %s0 = inlined_call_operand.vmem [shape: bf16[64,128], index: 0, kind: input, shape index: {}]
  %s1 = inlined_call_operand.vmem [shape: bf16[64,128], index: 1, kind: input, shape index: {}]
  %s2 = inlined_call_operand.vmem [shape: bf16[128,128], index: 2, kind: input, shape index: {}]
  %s3 = inlined_call_operand.vmem [shape: f32[1,128], index: 3, kind: input, shape index: {}]
  %s4 = inlined_call_operand.vmem [shape: bf16[128,128], index: 4, kind: input, shape index: {}]
  %s5 = inlined_call_operand.vmem [shape: f32[1,128], index: 5, kind: input, shape index: {}]
  %s6 = inlined_call_operand.vmem [shape: bf16[128,128], index: 6, kind: input, shape index: {}]
  %s7 = inlined_call_operand.vmem [shape: f32[1,128], index: 7, kind: input, shape index: {}]
  %s8 = inlined_call_operand.vmem [shape: f32[128,128], index: 8, kind: output, shape index: {0}]
  %s9 = inlined_call_operand.vmem [shape: f32[8,128], index: 9, kind: output, shape index: {1}]
  %10 = xla_tuple %s8, %s9
  %s11 = sld [smem:[#allocation0]]
  $region54: #{_forward.1} parent=0
    _
  %s13 = ssub.s32 1, %s11
  %s14 = scalar_select 0, %s13, %s11
  // Predicated region
  $region2: #{_forward.1} parent=0 // pred_check
    _
  $region3: #{_forward.1} parent=0 // pred_check_branch
    %16 = sbr.rel (0) target = $region5
  $region4: #{_forward.1} parent=0 // pred_region
    %s17 = sadd.s32 0, 0
    %s18 = smul.u32 8, %s17
    %p19 = scmp.lt.s32.totalorder %s18, 7
    %s20 = scalar_select %p19, %s18, 7
    %s21 = smul.addr %s20, 4
    %s22 = scalar_lea.vmem %s0, %s21
    %s23 = sadd.s32 0, 0
    %s24 = smul.u32 8, %s23
  $region5: #{_forward.1} parent=0 // pred_fallthru
    _
  // Predicated region
  $region6: #{_forward.1} parent=0 // pred_check
    _
  $region7: #{_forward.1} parent=0 // pred_check_branch
    %26 = sbr.rel (0) target = $region9
  $region8: #{_forward.1} parent=0 // pred_region
    %s27 = sadd.s32 0, 0
    %s28 = smul.u32 8, %s27
    %p29 = scmp.lt.s32.totalorder %s28, 7
    %s30 = scalar_select %p29, %s28, 7
    %s31 = smul.addr %s30, 4
    %s32 = scalar_lea.vmem %s1, %s31
    %s33 = sadd.s32 0, 0
    %s34 = smul.u32 8, %s33
  $region9: #{_forward.1} parent=0 // pred_fallthru
    _
  // Predicated region
  $region10: #{_forward.1} parent=0 // pred_check
    _
  $region11: #{_forward.1} parent=0 // pred_check_branch
    %36 = sbr.rel (0) target = $region13
  $region12: #{_forward.1} parent=0 // pred_region
    _
  $region13: #{_forward.1} parent=0 // pred_fallthru
    _
  // Predicated region
  $region14: #{_forward.1} parent=0 // pred_check
    _
  $region15: #{_forward.1} parent=0 // pred_check_branch
    %38 = sbr.rel (0) target = $region17
  $region16: #{_forward.1} parent=0 // pred_region
    _
  $region17: #{_forward.1} parent=0 // pred_fallthru
    _
  // Predicated region
  $region18: #{_forward.1} parent=0 // pred_check
    _
  $region19: #{_forward.1} parent=0 // pred_check_branch
    %40 = sbr.rel (0) target = $region21
  $region20: #{_forward.1} parent=0 // pred_region
    _
  $region21: #{_forward.1} parent=0 // pred_fallthru
    _
  // Predicated region
  $region22: #{_forward.1} parent=0 // pred_check
    _
  $region23: #{_forward.1} parent=0 // pred_check_branch
    %42 = sbr.rel (0) target = $region25
  $region24: #{_forward.1} parent=0 // pred_region
    _
  $region25: #{_forward.1} parent=0 // pred_fallthru
    _
  // Predicated region
  $region26: #{_forward.1} parent=0 // pred_check
    _
  $region27: #{_forward.1} parent=0 // pred_check_branch
    %44 = sbr.rel (0) target = $region29
  $region28: #{_forward.1} parent=0 // pred_region
    _
  $region29: #{_forward.1} parent=0 // pred_fallthru
    _
  // Predicated region
  $region30: #{_forward.1} parent=0 // pred_check
    _
  $region31: #{_forward.1} parent=0 // pred_check_branch
    %46 = sbr.rel (0) target = $region33
  $region32: #{_forward.1} parent=0 // pred_region
    _
  $region33: #{_forward.1} parent=0 // pred_fallthru
    _
  %s47 = sadd.s32 0, 0
  %s48 = smul.u32 8, %s47
  %p49 = scmp.lt.s32.totalorder %s48, 7
  %s50 = scalar_select %p49, %s48, 7
  %s51 = smul.addr %s50, 4
  %s52 = scalar_lea.vmem %s0, %s51
  %s53 = sadd.s32 0, 0
  %s54 = smul.u32 8, %s53
  %p55 = scmp.lt.s32.totalorder %s54, 7
  %s56 = scalar_select %p55, %s54, 7
  %s57 = smul.addr %s56, 4
  %s58 = scalar_lea.vmem %s1, %s57
  %s59 = sadd.s32 0, 0
  %s60 = smul.u32 8, %s59
  %p61 = scmp.lt.s32.totalorder %s60, 7
  %s62 = scalar_select %p61, %s60, 7
  %s63 = smul.addr %s62, 4
  %s64 = scalar_lea.vmem %s0, %s63
  %s65 = sadd.s32 0, 0
  %s66 = smul.u32 8, %s65
  %s67 = sadd.s32 0, 0
  %s68 = smul.u32 8, %s67
  %p69 = scmp.lt.s32.totalorder %s68, 7
  %s70 = scalar_select %p69, %s68, 7
  %s71 = smul.addr %s70, 4
  %s72 = scalar_lea.vmem %s1, %s71
  %s73 = sadd.s32 0, 0
  %s74 = smul.u32 8, %s73
  %p75 = scmp.eq.s32.totalorder 0, 0
  // Predicated region
  $region34: #{_forward.1} parent=0 // pred_check
    %p76 = pneg %p75
  $region35: #{_forward.1} parent=0 // pred_check_branch
    %78 = sbr.rel (%p76) target = $region37
  $region36: #{_forward.1} parent=0 // pred_region
    %79 = vst [vmem:[%s8] sm:$0xff] 0.0
    %80 = vst [vmem:[%s8 + $0x8] sm:$0xff] 0.0
    %81 = vst [vmem:[%s8 + $0x10] sm:$0xff] 0.0
    %82 = vst [vmem:[%s8 + $0x18] sm:$0xff] 0.0
    %83 = vst [vmem:[%s8 + $0x20] sm:$0xff] 0.0
    %84 = vst [vmem:[%s8 + $0x28] sm:$0xff] 0.0
    %85 = vst [vmem:[%s8 + $0x30] sm:$0xff] 0.0
    %86 = vst [vmem:[%s8 + $0x38] sm:$0xff] 0.0
    %87 = vst [vmem:[%s8 + $0x40] sm:$0xff] 0.0
    %88 = vst [vmem:[%s8 + $0x48] sm:$0xff] 0.0
    %89 = vst [vmem:[%s8 + $0x50] sm:$0xff] 0.0
    %90 = vst [vmem:[%s8 + $0x58] sm:$0xff] 0.0
    %91 = vst [vmem:[%s8 + $0x60] sm:$0xff] 0.0
    %92 = vst [vmem:[%s8 + $0x68] sm:$0xff] 0.0
    %93 = vst [vmem:[%s8 + $0x70] sm:$0xff] 0.0
    %94 = vst [vmem:[%s8 + $0x78] sm:$0xff] 0.0
    %95 = vst [vmem:[%s9] sm:$0xff] 0.0
  $region37: #{_forward.1} parent=0 // pred_fallthru
    _
  %v96 = vld [vmem:[%s64] sm:$0xf]
  %v97 = vld [vmem:[%s64 + $0x4] sm:$0xf]
  %v98 = vld [vmem:[%s64 + $0x8] sm:$0xf]
  %v99 = vld [vmem:[%s64 + $0xc] sm:$0xf]
  %v100 = vld [vmem:[%s64 + $0x10] sm:$0xf]
  %v101 = vld [vmem:[%s64 + $0x14] sm:$0xf]
  %v102 = vld [vmem:[%s64 + $0x18] sm:$0xf]
  %v103 = vld [vmem:[%s64 + $0x1c] sm:$0xf]
  %v104 = vld [vmem:[%s72] sm:$0xf]
  %v105 = vld [vmem:[%s72 + $0x4] sm:$0xf]
  %v106 = vld [vmem:[%s72 + $0x8] sm:$0xf]
  %v107 = vld [vmem:[%s72 + $0xc] sm:$0xf]
  %v108 = vld [vmem:[%s72 + $0x10] sm:$0xf]
  %v109 = vld [vmem:[%s72 + $0x14] sm:$0xf]
  %v110 = vld [vmem:[%s72 + $0x18] sm:$0xf]
  %v111 = vld [vmem:[%s72 + $0x1c] sm:$0xf]
  %v120 = vunpack.c.l.b16 %v96
  %v121 = vunpack.c.l.b16 %v97
  %v122 = vunpack.c.l.b16 %v98
  %v123 = vunpack.c.l.b16 %v99
  %v124 = vunpack.c.l.b16 %v100
  %v125 = vunpack.c.l.b16 %v101
  %v126 = vunpack.c.l.b16 %v102
  %v127 = vunpack.c.l.b16 %v103
  %v128 = vpack.c.b16 %v121, %v120
  %v129 = vpack.c.b16 %v123, %v122
  %v130 = vpack.c.b16 %v125, %v124
  %v131 = vpack.c.b16 %v127, %v126
  %v144 = vunpack.c.l.b16 %v104
  %v145 = vunpack.c.l.b16 %v105
  %v146 = vunpack.c.l.b16 %v106
  %v147 = vunpack.c.l.b16 %v107
  %v148 = vunpack.c.l.b16 %v108
  %v149 = vunpack.c.l.b16 %v109
  %v150 = vunpack.c.l.b16 %v110
  %v151 = vunpack.c.l.b16 %v111
  %v152 = vpack.c.b16 %v145, %v144
  %v153 = vpack.c.b16 %v147, %v146
  %v154 = vpack.c.b16 %v149, %v148
  %v155 = vpack.c.b16 %v151, %v150
  %v160 = vld [vmem:[%s2] sm:$0xf]
  %v161 = vld [vmem:[%s2 + $0x4] sm:$0xf]
  %v162 = vld [vmem:[%s2 + $0x8] sm:$0xf]
  %v163 = vld [vmem:[%s2 + $0xc] sm:$0xf]
  %v164 = vld [vmem:[%s2 + $0x10] sm:$0xf]
  %v165 = vld [vmem:[%s2 + $0x14] sm:$0xf]
  %v166 = vld [vmem:[%s2 + $0x18] sm:$0xf]
  %v167 = vld [vmem:[%s2 + $0x1c] sm:$0xf]
  %v168 = vld [vmem:[%s2 + $0x20] sm:$0xf]
  %v169 = vld [vmem:[%s2 + $0x24] sm:$0xf]
  %v170 = vld [vmem:[%s2 + $0x28] sm:$0xf]
  %v171 = vld [vmem:[%s2 + $0x2c] sm:$0xf]
  %v172 = vld [vmem:[%s2 + $0x30] sm:$0xf]
  %v173 = vld [vmem:[%s2 + $0x34] sm:$0xf]
  %v174 = vld [vmem:[%s2 + $0x38] sm:$0xf]
  %v175 = vld [vmem:[%s2 + $0x3c] sm:$0xf]
  %v176 = vld [vmem:[%s3] sm:$0x1]
  %v178 = vperm.slane %v176, 0
  %v196 = vunpack.c.l.b16 %v160
  %v197 = vunpack.c.l.b16 %v161
  %v198 = vunpack.c.l.b16 %v162
  %v199 = vunpack.c.l.b16 %v163
  %v200 = vunpack.c.l.b16 %v164
  %v201 = vunpack.c.l.b16 %v165
  %v202 = vunpack.c.l.b16 %v166
  %v203 = vunpack.c.l.b16 %v167
  %v204 = vunpack.c.l.b16 %v168
  %v205 = vunpack.c.l.b16 %v169
  %v206 = vunpack.c.l.b16 %v170
  %v207 = vunpack.c.l.b16 %v171
  %v208 = vunpack.c.l.b16 %v172
  %v209 = vunpack.c.l.b16 %v173
  %v210 = vunpack.c.l.b16 %v174
  %v211 = vunpack.c.l.b16 %v175
  %v212 = vpack.c.b16 %v197, %v196
  %v213 = vpack.c.b16 %v199, %v198
  %v214 = vpack.c.b16 %v201, %v200
  %v215 = vpack.c.b16 %v203, %v202
  %v216 = vpack.c.b16 %v205, %v204
  %v217 = vpack.c.b16 %v207, %v206
  %v218 = vpack.c.b16 %v209, %v208
  %v219 = vpack.c.b16 %v211, %v210
  %228 = vmatpush.bf16.msra.mxu0 %v219
  %229 = vmatpush.bf16.msra.mxu0 %v218
  %230 = vmatpush.bf16.msra.mxu0 %v217
  %231 = vmatpush.bf16.msra.mxu0 %v216
  %232 = vmatpush.bf16.msra.mxu0 %v215
  %233 = vmatpush.bf16.msra.mxu0 %v214
  %234 = vmatpush.bf16.msra.mxu0 %v213
  %235 = vmatpush.bf16.msra.mxu0 %v212
  %236 = vmatmul.bf16.gmra.mxu0 %v128
  %v237 = vpop.f32.mrf.mxu0
  %v238 = vadd.f32 %v178, %v237
  %v239 = vpop.f32.mrf.mxu0
  %v240 = vadd.f32 %v178, %v239
  %241 = vmatmul.bf16.gmra.mxu0 %v129
  %v242 = vpop.f32.mrf.mxu0
  %v243 = vadd.f32 %v178, %v242
  %v244 = vpop.f32.mrf.mxu0
  %v245 = vadd.f32 %v178, %v244
  %246 = vmatmul.bf16.gmra.mxu0 %v130
  %v247 = vpop.f32.mrf.mxu0
  %v248 = vadd.f32 %v178, %v247
  %v249 = vpop.f32.mrf.mxu0
  %v250 = vadd.f32 %v178, %v249
  %251 = vmatmul.bf16.gmra.mxu0 %v131
  %v252 = vpop.f32.mrf.mxu0
  %v253 = vadd.f32 %v178, %v252
  %v254 = vpop.f32.mrf.mxu0
  %v255 = vadd.f32 %v178, %v254
  %256 = vmatmul.bf16.gmra.mxu0 %v152
  %v257 = vpop.f32.mrf.mxu0
  %v258 = vadd.f32 %v178, %v257
  %v259 = vpop.f32.mrf.mxu0
  %v260 = vadd.f32 %v178, %v259
  %261 = vmatmul.bf16.gmra.mxu0 %v153
  %v262 = vpop.f32.mrf.mxu0
  %v263 = vadd.f32 %v178, %v262
  %v264 = vpop.f32.mrf.mxu0
  %v265 = vadd.f32 %v178, %v264
  %266 = vmatmul.bf16.gmra.mxu0 %v154
  %v267 = vpop.f32.mrf.mxu0
  %v268 = vadd.f32 %v178, %v267
  %v269 = vpop.f32.mrf.mxu0
  %v270 = vadd.f32 %v178, %v269
  %271 = vmatmul.bf16.gmra.mxu0 %v155
  %v272 = vpop.f32.mrf.mxu0
  %v273 = vadd.f32 %v178, %v272
  %v274 = vpop.f32.mrf.mxu0
  %v275 = vadd.f32 %v178, %v274
  %276 = vdwg.mxu0
  %v277 = vpack.c.bf16 %v240, %v238
  %v278 = vpack.c.bf16 %v245, %v243
  %v279 = vpack.c.bf16 %v250, %v248
  %v280 = vpack.c.bf16 %v255, %v253
  %v281 = vpack.c.bf16 %v260, %v258
  %v282 = vpack.c.bf16 %v265, %v263
  %v283 = vpack.c.bf16 %v270, %v268
  %v284 = vpack.c.bf16 %v275, %v273
  %v285 = vld [vmem:[%s4] sm:$0xf]
  %v286 = vld [vmem:[%s4 + $0x4] sm:$0xf]
  %v287 = vld [vmem:[%s4 + $0x8] sm:$0xf]
  %v288 = vld [vmem:[%s4 + $0xc] sm:$0xf]
  %v289 = vld [vmem:[%s4 + $0x10] sm:$0xf]
  %v290 = vld [vmem:[%s4 + $0x14] sm:$0xf]
  %v291 = vld [vmem:[%s4 + $0x18] sm:$0xf]
  %v292 = vld [vmem:[%s4 + $0x1c] sm:$0xf]
  %v293 = vld [vmem:[%s4 + $0x20] sm:$0xf]
  %v294 = vld [vmem:[%s4 + $0x24] sm:$0xf]
  %v295 = vld [vmem:[%s4 + $0x28] sm:$0xf]
  %v296 = vld [vmem:[%s4 + $0x2c] sm:$0xf]
  %v297 = vld [vmem:[%s4 + $0x30] sm:$0xf]
  %v298 = vld [vmem:[%s4 + $0x34] sm:$0xf]
  %v299 = vld [vmem:[%s4 + $0x38] sm:$0xf]
  %v300 = vld [vmem:[%s4 + $0x3c] sm:$0xf]
  %v301 = vld [vmem:[%s5] sm:$0x1]
  %v303 = vperm.slane %v301, 0
  %v321 = vunpack.c.l.b16 %v285
  %v322 = vunpack.c.l.b16 %v286
  %v323 = vunpack.c.l.b16 %v287
  %v324 = vunpack.c.l.b16 %v288
  %v325 = vunpack.c.l.b16 %v289
  %v326 = vunpack.c.l.b16 %v290
  %v327 = vunpack.c.l.b16 %v291
  %v328 = vunpack.c.l.b16 %v292
  %v329 = vunpack.c.l.b16 %v293
  %v330 = vunpack.c.l.b16 %v294
  %v331 = vunpack.c.l.b16 %v295
  %v332 = vunpack.c.l.b16 %v296
  %v333 = vunpack.c.l.b16 %v297
  %v334 = vunpack.c.l.b16 %v298
  %v335 = vunpack.c.l.b16 %v299
  %v336 = vunpack.c.l.b16 %v300
  %v337 = vpack.c.b16 %v322, %v321
  %v338 = vpack.c.b16 %v324, %v323
  %v339 = vpack.c.b16 %v326, %v325
  %v340 = vpack.c.b16 %v328, %v327
  %v341 = vpack.c.b16 %v330, %v329
  %v342 = vpack.c.b16 %v332, %v331
  %v343 = vpack.c.b16 %v334, %v333
  %v344 = vpack.c.b16 %v336, %v335
  %353 = vmatpush.bf16.msra.mxu0 %v344
  %354 = vmatpush.bf16.msra.mxu0 %v343
  %355 = vmatpush.bf16.msra.mxu0 %v342
  %356 = vmatpush.bf16.msra.mxu0 %v341
  %357 = vmatpush.bf16.msra.mxu0 %v340
  %358 = vmatpush.bf16.msra.mxu0 %v339
  %359 = vmatpush.bf16.msra.mxu0 %v338
  %360 = vmatpush.bf16.msra.mxu0 %v337
  %361 = vmatmul.bf16.gmra.mxu0 %v277
  %v362 = vpop.f32.mrf.mxu0
  %v363 = vadd.f32 %v303, %v362
  %v364 = vpop.f32.mrf.mxu0
  %v365 = vadd.f32 %v303, %v364
  %366 = vmatmul.bf16.gmra.mxu0 %v278
  %v367 = vpop.f32.mrf.mxu0
  %v368 = vadd.f32 %v303, %v367
  %v369 = vpop.f32.mrf.mxu0
  %v370 = vadd.f32 %v303, %v369
  %371 = vmatmul.bf16.gmra.mxu0 %v279
  %v372 = vpop.f32.mrf.mxu0
  %v373 = vadd.f32 %v303, %v372
  %v374 = vpop.f32.mrf.mxu0
  %v375 = vadd.f32 %v303, %v374
  %376 = vmatmul.bf16.gmra.mxu0 %v280
  %v377 = vpop.f32.mrf.mxu0
  %v378 = vadd.f32 %v303, %v377
  %v379 = vpop.f32.mrf.mxu0
  %v380 = vadd.f32 %v303, %v379
  %381 = vmatmul.bf16.gmra.mxu0 %v281
  %v382 = vpop.f32.mrf.mxu0
  %v383 = vadd.f32 %v303, %v382
  %v384 = vpop.f32.mrf.mxu0
  %v385 = vadd.f32 %v303, %v384
  %386 = vmatmul.bf16.gmra.mxu0 %v282
  %v387 = vpop.f32.mrf.mxu0
  %v388 = vadd.f32 %v303, %v387
  %v389 = vpop.f32.mrf.mxu0
  %v390 = vadd.f32 %v303, %v389
  %391 = vmatmul.bf16.gmra.mxu0 %v283
  %v392 = vpop.f32.mrf.mxu0
  %v393 = vadd.f32 %v303, %v392
  %v394 = vpop.f32.mrf.mxu0
  %v395 = vadd.f32 %v303, %v394
  %396 = vmatmul.bf16.gmra.mxu0 %v284
  %v397 = vpop.f32.mrf.mxu0
  %v398 = vadd.f32 %v303, %v397
  %v399 = vpop.f32.mrf.mxu0
  %v400 = vadd.f32 %v303, %v399
  %401 = vdwg.mxu0
  %v402 = vmax.f32 %v363, 0.0
  %v403 = vmax.f32 %v365, 0.0
  %v404 = vmax.f32 %v368, 0.0
  %v405 = vmax.f32 %v370, 0.0
  %v406 = vmax.f32 %v373, 0.0
  %v407 = vmax.f32 %v375, 0.0
  %v408 = vmax.f32 %v378, 0.0
  %v409 = vmax.f32 %v380, 0.0
  %v410 = vmax.f32 %v383, 0.0
  %v411 = vmax.f32 %v385, 0.0
  %v412 = vmax.f32 %v388, 0.0
  %v413 = vmax.f32 %v390, 0.0
  %v414 = vmax.f32 %v393, 0.0
  %v415 = vmax.f32 %v395, 0.0
  %v416 = vmax.f32 %v398, 0.0
  %v417 = vmax.f32 %v400, 0.0
  %v418 = vpack.c.bf16 %v403, %v402
  %v419 = vpack.c.bf16 %v405, %v404
  %v420 = vpack.c.bf16 %v407, %v406
  %v421 = vpack.c.bf16 %v409, %v408
  %v422 = vpack.c.bf16 %v411, %v410
  %v423 = vpack.c.bf16 %v413, %v412
  %v424 = vpack.c.bf16 %v415, %v414
  %v425 = vpack.c.bf16 %v417, %v416
  %v426 = vld [vmem:[%s6] sm:$0xf]
  %v427 = vld [vmem:[%s6 + $0x4] sm:$0xf]
  %v428 = vld [vmem:[%s6 + $0x8] sm:$0xf]
  %v429 = vld [vmem:[%s6 + $0xc] sm:$0xf]
  %v430 = vld [vmem:[%s6 + $0x10] sm:$0xf]
  %v431 = vld [vmem:[%s6 + $0x14] sm:$0xf]
  %v432 = vld [vmem:[%s6 + $0x18] sm:$0xf]
  %v433 = vld [vmem:[%s6 + $0x1c] sm:$0xf]
  %v434 = vld [vmem:[%s6 + $0x20] sm:$0xf]
  %v435 = vld [vmem:[%s6 + $0x24] sm:$0xf]
  %v436 = vld [vmem:[%s6 + $0x28] sm:$0xf]
  %v437 = vld [vmem:[%s6 + $0x2c] sm:$0xf]
  %v438 = vld [vmem:[%s6 + $0x30] sm:$0xf]
  %v439 = vld [vmem:[%s6 + $0x34] sm:$0xf]
  %v440 = vld [vmem:[%s6 + $0x38] sm:$0xf]
  %v441 = vld [vmem:[%s6 + $0x3c] sm:$0xf]
  %v442 = vld [vmem:[%s7] sm:$0x1]
  %v444 = vperm.slane %v442, 0
  %v462 = vunpack.c.l.b16 %v426
  %v463 = vunpack.c.l.b16 %v427
  %v464 = vunpack.c.l.b16 %v428
  %v465 = vunpack.c.l.b16 %v429
  %v466 = vunpack.c.l.b16 %v430
  %v467 = vunpack.c.l.b16 %v431
  %v468 = vunpack.c.l.b16 %v432
  %v469 = vunpack.c.l.b16 %v433
  %v470 = vunpack.c.l.b16 %v434
  %v471 = vunpack.c.l.b16 %v435
  %v472 = vunpack.c.l.b16 %v436
  %v473 = vunpack.c.l.b16 %v437
  %v474 = vunpack.c.l.b16 %v438
  %v475 = vunpack.c.l.b16 %v439
  %v476 = vunpack.c.l.b16 %v440
  %v477 = vunpack.c.l.b16 %v441
  %v478 = vpack.c.b16 %v463, %v462
  %v479 = vpack.c.b16 %v465, %v464
  %v480 = vpack.c.b16 %v467, %v466
  %v481 = vpack.c.b16 %v469, %v468
  %v482 = vpack.c.b16 %v471, %v470
  %v483 = vpack.c.b16 %v473, %v472
  %v484 = vpack.c.b16 %v475, %v474
  %v485 = vpack.c.b16 %v477, %v476
  %494 = vmatpush.bf16.msra.mxu0 %v485
  %495 = vmatpush.bf16.msra.mxu0 %v484
  %496 = vmatpush.bf16.msra.mxu0 %v483
  %497 = vmatpush.bf16.msra.mxu0 %v482
  %498 = vmatpush.bf16.msra.mxu0 %v481
  %499 = vmatpush.bf16.msra.mxu0 %v480
  %500 = vmatpush.bf16.msra.mxu0 %v479
  %501 = vmatpush.bf16.msra.mxu0 %v478
  %502 = vmatmul.bf16.gmra.mxu0 %v418
  %v503 = vpop.f32.mrf.mxu0
  %v504 = vadd.f32 %v444, %v503
  %v505 = vpop.f32.mrf.mxu0
  %v506 = vadd.f32 %v444, %v505
  %507 = vmatmul.bf16.gmra.mxu0 %v419
  %v508 = vpop.f32.mrf.mxu0
  %v509 = vadd.f32 %v444, %v508
  %v510 = vpop.f32.mrf.mxu0
  %v511 = vadd.f32 %v444, %v510
  %512 = vmatmul.bf16.gmra.mxu0 %v420
  %v513 = vpop.f32.mrf.mxu0
  %v514 = vadd.f32 %v444, %v513
  %v515 = vpop.f32.mrf.mxu0
  %v516 = vadd.f32 %v444, %v515
  %517 = vmatmul.bf16.gmra.mxu0 %v421
  %v518 = vpop.f32.mrf.mxu0
  %v519 = vadd.f32 %v444, %v518
  %v520 = vpop.f32.mrf.mxu0
  %v521 = vadd.f32 %v444, %v520
  %522 = vmatmul.bf16.gmra.mxu0 %v422
  %v523 = vpop.f32.mrf.mxu0
  %v524 = vadd.f32 %v444, %v523
  %v525 = vpop.f32.mrf.mxu0
  %v526 = vadd.f32 %v444, %v525
  %527 = vmatmul.bf16.gmra.mxu0 %v423
  %v528 = vpop.f32.mrf.mxu0
  %v529 = vadd.f32 %v444, %v528
  %v530 = vpop.f32.mrf.mxu0
  %v531 = vadd.f32 %v444, %v530
  %532 = vmatmul.bf16.gmra.mxu0 %v424
  %v533 = vpop.f32.mrf.mxu0
  %v534 = vadd.f32 %v444, %v533
  %v535 = vpop.f32.mrf.mxu0
  %v536 = vadd.f32 %v444, %v535
  %537 = vmatmul.bf16.gmra.mxu0 %v425
  %v538 = vpop.f32.mrf.mxu0
  %v539 = vadd.f32 %v444, %v538
  %v540 = vpop.f32.mrf.mxu0
  %v541 = vadd.f32 %v444, %v540
  %542 = vdwg.mxu0
  %v543 = vld [vmem:[%s8] sm:$0xff]
  %v544 = vld [vmem:[%s8 + $0x8] sm:$0xff]
  %v545 = vld [vmem:[%s8 + $0x10] sm:$0xff]
  %v546 = vld [vmem:[%s8 + $0x18] sm:$0xff]
  %v547 = vld [vmem:[%s8 + $0x20] sm:$0xff]
  %v548 = vld [vmem:[%s8 + $0x28] sm:$0xff]
  %v549 = vld [vmem:[%s8 + $0x30] sm:$0xff]
  %v550 = vld [vmem:[%s8 + $0x38] sm:$0xff]
  %v551 = vld [vmem:[%s8 + $0x40] sm:$0xff]
  %v552 = vld [vmem:[%s8 + $0x48] sm:$0xff]
  %v553 = vld [vmem:[%s8 + $0x50] sm:$0xff]
  %v554 = vld [vmem:[%s8 + $0x58] sm:$0xff]
  %v555 = vld [vmem:[%s8 + $0x60] sm:$0xff]
  %v556 = vld [vmem:[%s8 + $0x68] sm:$0xff]
  %v557 = vld [vmem:[%s8 + $0x70] sm:$0xff]
  %v558 = vld [vmem:[%s8 + $0x78] sm:$0xff]
  %559 = vxpose.xlu0.b32.start [1/16] %v504, 128
  %560 = vxpose.xlu0.b32.cont [2/16] %v506, 128
  %561 = vxpose.xlu0.b32.cont [3/16] %v509, 128
  %562 = vxpose.xlu0.b32.cont [4/16] %v511, 128
  %563 = vxpose.xlu0.b32.cont [5/16] %v514, 128
  %564 = vxpose.xlu0.b32.cont [6/16] %v516, 128
  %565 = vxpose.xlu0.b32.cont [7/16] %v519, 128
  %566 = vxpose.xlu0.b32.cont [8/16] %v521, 128
  %567 = vxpose.xlu0.b32.cont [9/16] 0.0, 128
  %568 = vxpose.xlu0.b32.cont [10/16] 0.0, 128
  %569 = vxpose.xlu0.b32.cont [11/16] 0.0, 128
  %570 = vxpose.xlu0.b32.cont [12/16] 0.0, 128
  %571 = vxpose.xlu0.b32.cont [13/16] 0.0, 128
  %572 = vxpose.xlu0.b32.cont [14/16] 0.0, 128
  %573 = vxpose.xlu0.b32.cont [15/16] 0.0, 128
  %574 = vxpose.xlu0.b32.end [16/16] 0.0, 128
  %v575 = vpop.trf.xlu0
  %v576 = vpop.trf.xlu0
  %v577 = vpop.trf.xlu0
  %v578 = vpop.trf.xlu0
  %v579 = vpop.trf.xlu0
  %v580 = vpop.trf.xlu0
  %v581 = vpop.trf.xlu0
  %v582 = vpop.trf.xlu0
  %v583 = vpop.trf.xlu0
  %v584 = vpop.trf.xlu0
  %v585 = vpop.trf.xlu0
  %v586 = vpop.trf.xlu0
  %v587 = vpop.trf.xlu0
  %v588 = vpop.trf.xlu0
  %v589 = vpop.trf.xlu0
  %v590 = vpop.trf.xlu0
  %vm591 = vcmask 523264
  %v593 = vsel %vm591, %v575, 0
  %v596 = vsel %vm591, %v576, 0
  %v599 = vsel %vm591, %v577, 0
  %v602 = vsel %vm591, %v578, 0
  %v605 = vsel %vm591, %v579, 0
  %v608 = vsel %vm591, %v580, 0
  %v611 = vsel %vm591, %v581, 0
  %v614 = vsel %vm591, %v582, 0
  %v617 = vsel %vm591, %v583, 0
  %v620 = vsel %vm591, %v584, 0
  %v623 = vsel %vm591, %v585, 0
  %v626 = vsel %vm591, %v586, 0
  %v629 = vsel %vm591, %v587, 0
  %v632 = vsel %vm591, %v588, 0
  %v635 = vsel %vm591, %v589, 0
  %v638 = vsel %vm591, %v590, 0
  %640 = vmatpush.msra.mxu0 0.0
  %641 = vmatpush.msra.mxu0 0.0
  %642 = vmatpush.msra.mxu0 0.0
  %643 = vmatpush.msra.mxu0 0.0
  %644 = vmatpush.msra.mxu0 0.0
  %645 = vmatpush.msra.mxu0 0.0
  %646 = vmatpush.msra.mxu0 0.0
  %647 = vmatpush.msra.mxu0 0.0
  %648 = vmatpush.msra.mxu0 %v541
  %649 = vmatpush.msra.mxu0 %v539
  %650 = vmatpush.msra.mxu0 %v536
  %651 = vmatpush.msra.mxu0 %v534
  %652 = vmatpush.msra.mxu0 %v531
  %653 = vmatpush.msra.mxu0 %v529
  %654 = vmatpush.msra.mxu0 %v526
  %655 = vmatpush.msra.mxu0 %v524
  %656 = vmatmul.f32.gmra.mxu0 %v593
  %v657 = vpop.f32.mrf.mxu0
  %v658 = vadd.f32 0.0, %v657
  %659 = vmatmul.f32.gmra.mxu0 %v596
  %v660 = vpop.f32.mrf.mxu0
  %v661 = vadd.f32 0.0, %v660
  %662 = vmatmul.f32.gmra.mxu0 %v599
  %v663 = vpop.f32.mrf.mxu0
  %v664 = vadd.f32 0.0, %v663
  %665 = vmatmul.f32.gmra.mxu0 %v602
  %v666 = vpop.f32.mrf.mxu0
  %v667 = vadd.f32 0.0, %v666
  %668 = vmatmul.f32.gmra.mxu0 %v605
  %v669 = vpop.f32.mrf.mxu0
  %v670 = vadd.f32 0.0, %v669
  %671 = vmatmul.f32.gmra.mxu0 %v608
  %v672 = vpop.f32.mrf.mxu0
  %v673 = vadd.f32 0.0, %v672
  %674 = vmatmul.f32.gmra.mxu0 %v611
  %v675 = vpop.f32.mrf.mxu0
  %v676 = vadd.f32 0.0, %v675
  %677 = vmatmul.f32.gmra.mxu0 %v614
  %v678 = vpop.f32.mrf.mxu0
  %v679 = vadd.f32 0.0, %v678
  %680 = vmatmul.f32.gmra.mxu0 %v617
  %v681 = vpop.f32.mrf.mxu0
  %v682 = vadd.f32 0.0, %v681
  %683 = vmatmul.f32.gmra.mxu0 %v620
  %v684 = vpop.f32.mrf.mxu0
  %v685 = vadd.f32 0.0, %v684
  %686 = vmatmul.f32.gmra.mxu0 %v623
  %v687 = vpop.f32.mrf.mxu0
  %v688 = vadd.f32 0.0, %v687
  %689 = vmatmul.f32.gmra.mxu0 %v626
  %v690 = vpop.f32.mrf.mxu0
  %v691 = vadd.f32 0.0, %v690
  %692 = vmatmul.f32.gmra.mxu0 %v629
  %v693 = vpop.f32.mrf.mxu0
  %v694 = vadd.f32 0.0, %v693
  %695 = vmatmul.f32.gmra.mxu0 %v632
  %v696 = vpop.f32.mrf.mxu0
  %v697 = vadd.f32 0.0, %v696
  %698 = vmatmul.f32.gmra.mxu0 %v635
  %v699 = vpop.f32.mrf.mxu0
  %v700 = vadd.f32 0.0, %v699
  %701 = vmatmul.f32.gmra.mxu0 %v638
  %v702 = vpop.f32.mrf.mxu0
  %v703 = vadd.f32 0.0, %v702
  %704 = vdwg.mxu0
  %v705 = vadd.f32 %v543, %v658
  %v706 = vadd.f32 %v544, %v661
  %v707 = vadd.f32 %v545, %v664
  %v708 = vadd.f32 %v546, %v667
  %v709 = vadd.f32 %v547, %v670
  %v710 = vadd.f32 %v548, %v673
  %v711 = vadd.f32 %v549, %v676
  %v712 = vadd.f32 %v550, %v679
  %v713 = vadd.f32 %v551, %v682
  %v714 = vadd.f32 %v552, %v685
  %v715 = vadd.f32 %v553, %v688
  %v716 = vadd.f32 %v554, %v691
  %v717 = vadd.f32 %v555, %v694
  %v718 = vadd.f32 %v556, %v697
  %v719 = vadd.f32 %v557, %v700
  %v720 = vadd.f32 %v558, %v703
  %721 = vst [vmem:[%s8] sm:$0xff] %v705
  %722 = vst [vmem:[%s8 + $0x8] sm:$0xff] %v706
  %723 = vst [vmem:[%s8 + $0x10] sm:$0xff] %v707
  %724 = vst [vmem:[%s8 + $0x18] sm:$0xff] %v708
  %725 = vst [vmem:[%s8 + $0x20] sm:$0xff] %v709
  %726 = vst [vmem:[%s8 + $0x28] sm:$0xff] %v710
  %727 = vst [vmem:[%s8 + $0x30] sm:$0xff] %v711
  %728 = vst [vmem:[%s8 + $0x38] sm:$0xff] %v712
  %729 = vst [vmem:[%s8 + $0x40] sm:$0xff] %v713
  %730 = vst [vmem:[%s8 + $0x48] sm:$0xff] %v714
  %731 = vst [vmem:[%s8 + $0x50] sm:$0xff] %v715
  %732 = vst [vmem:[%s8 + $0x58] sm:$0xff] %v716
  %733 = vst [vmem:[%s8 + $0x60] sm:$0xff] %v717
  %734 = vst [vmem:[%s8 + $0x68] sm:$0xff] %v718
  %735 = vst [vmem:[%s8 + $0x70] sm:$0xff] %v719
  %736 = vst [vmem:[%s8 + $0x78] sm:$0xff] %v720
  %v737 = vld [vmem:[%s9] sm:$0xff]
  %v738 = vadd.f32 %v504, %v506
  %v739 = vadd.f32 %v738, %v509
  %v740 = vadd.f32 %v739, %v511
  %v741 = vadd.f32 %v740, %v514
  %v742 = vadd.f32 %v741, %v516
  %v743 = vadd.f32 %v742, %v519
  %v744 = vadd.f32 %v743, %v521
  %v745 = vrot.slane %v744, 4
  %v746 = vadd.f32 %v744, %v745
  %v747 = vrot.slane %v746, 2
  %v748 = vadd.f32 %v746, %v747
  %v749 = vrot.slane %v748, 1
  %v750 = vadd.f32 %v748, %v749
  %v751 = vadd.f32 %v524, %v526
  %v752 = vadd.f32 %v751, %v529
  %v753 = vadd.f32 %v752, %v531
  %v754 = vadd.f32 %v753, %v534
  %v755 = vadd.f32 %v754, %v536
  %v756 = vadd.f32 %v755, %v539
  %v757 = vadd.f32 %v756, %v541
  %v758 = vrot.slane %v757, 4
  %v759 = vadd.f32 %v757, %v758
  %v760 = vrot.slane %v759, 2
  %v761 = vadd.f32 %v759, %v760
  %v762 = vrot.slane %v761, 1
  %v763 = vadd.f32 %v761, %v762
  %v764 = vmul.f32 %v504, %v504
  %v765 = vmul.f32 %v506, %v506
  %v766 = vmul.f32 %v509, %v509
  %v767 = vmul.f32 %v511, %v511
  %v768 = vmul.f32 %v514, %v514
  %v769 = vmul.f32 %v516, %v516
  %v770 = vmul.f32 %v519, %v519
  %v771 = vmul.f32 %v521, %v521
  %v772 = vadd.f32 %v764, %v765
  %v773 = vadd.f32 %v772, %v766
  %v774 = vadd.f32 %v773, %v767
  %v775 = vadd.f32 %v774, %v768
  %v776 = vadd.f32 %v775, %v769
  %v777 = vadd.f32 %v776, %v770
  %v778 = vadd.f32 %v777, %v771
  %v779 = vrot.slane %v778, 4
  %v780 = vadd.f32 %v778, %v779
  %v781 = vrot.slane %v780, 2
  %v782 = vadd.f32 %v780, %v781
  %v783 = vrot.slane %v782, 1
  %v784 = vadd.f32 %v782, %v783
  %v785 = vmul.f32 %v524, %v524
  %v786 = vmul.f32 %v526, %v526
  %v787 = vmul.f32 %v529, %v529
  %v788 = vmul.f32 %v531, %v531
  %v789 = vmul.f32 %v534, %v534
  %v790 = vmul.f32 %v536, %v536
  %v791 = vmul.f32 %v539, %v539
  %v792 = vmul.f32 %v541, %v541
  %v793 = vadd.f32 %v785, %v786
  %v794 = vadd.f32 %v793, %v787
  %v795 = vadd.f32 %v794, %v788
  %v796 = vadd.f32 %v795, %v789
  %v797 = vadd.f32 %v796, %v790
  %v798 = vadd.f32 %v797, %v791
  %v799 = vadd.f32 %v798, %v792
  %v800 = vrot.slane %v799, 4
  %v801 = vadd.f32 %v799, %v800
  %v802 = vrot.slane %v801, 2
  %v803 = vadd.f32 %v801, %v802
  %v804 = vrot.slane %v803, 1
  %v805 = vadd.f32 %v803, %v804
  %vm806 = vcmask 1040384
  %v807 = vsel %vm806, %v750, %v763
  %vm808 = vcmask 1041408
  %v809 = vsel %vm808, %v807, %v784
  %vm810 = vcmask 1042432
  %v811 = vsel %vm810, %v809, %v805
  %vm812 = vcmask 1043456
  %v813 = vsel %vm812, %v811, 0.0
  %v814 = vadd.f32 %v737, %v813
  %815 = vst [vmem:[%s9] sm:$0xff] %v814
  // Predicated region
  $region38: #{_forward.1} parent=0 // pred_check
    _
  $region39: #{_forward.1} parent=0 // pred_check_branch
    %817 = sbr.rel (0) target = $region41
  $region40: #{_forward.1} parent=0 // pred_region
    _
  $region41: #{_forward.1} parent=0 // pred_fallthru
    _
  // Predicated region
  $region42: #{_forward.1} parent=0 // pred_check
    _
  $region43: #{_forward.1} parent=0 // pred_check_branch
    %819 = sbr.rel (0) target = $region45
  $region44: #{_forward.1} parent=0 // pred_region
    _
  $region45: #{_forward.1} parent=0 // pred_fallthru
    _
  // Predicated region
  $region46: #{_forward.1} parent=0 // pred_check
    _
  $region47: #{_forward.1} parent=0 // pred_check_branch
    %821 = sbr.rel (0) target = $region49
  $region48: #{_forward.1} parent=0 // pred_region
    _
  $region49: #{_forward.1} parent=0 // pred_fallthru
    _
  // Predicated region
  $region50: #{_forward.1} parent=0 // pred_check
    _
  $region51: #{_forward.1} parent=0 // pred_check_branch
    %823 = sbr.rel (0) target = $region53
  $region52: #{_forward.1} parent=0 // pred_region
    _
  $region53: #{_forward.1} parent=0 // pred_fallthru
    _

</llo_original>
